<compile_context>
chip_gen: v6e
topology: v6e:2x2x1
jax: 0.10.0
libtpu: 0.0.40
codegen_flags: <defaults>
</compile_context>

<pallas_src>
import jax
import jax.numpy as jnp
from jax.experimental import pallas as pl
from jax.experimental.pallas import tpu as pltpu

_H1, _H2, _OUT = 64, 32, 2


def _round_up(n, m):
    return ((n + m - 1) // m) * m


def _vmem_capacity_bytes():
    try:
        return int(pltpu.get_tpu_info().vmem_capacity_bytes)
    except Exception:
        return 64 << 20  # conservative fallback (v7x per-TC VMEM)


def _make_kernel(num_learners, has_anomaly):
    """Build the fused kernel body for a given learner count / anomaly-head presence."""

    def kernel(*refs):
        # refs: x_0..x_{L-1}, (lw_0, lb_0, ..., lw_{L-1}, lb_{L-1}),
        #       w1, b1, w2, b2, w3t, b3, [awt, ab], meta_out, [anom_out]
        idx = 0
        x_refs = refs[idx:idx + num_learners]; idx += num_learners
        lp_refs = refs[idx:idx + 2 * num_learners]; idx += 2 * num_learners
        w1_ref, b1_ref, w2_ref, b2_ref, w3t_ref, b3_ref = refs[idx:idx + 6]; idx += 6
        if has_anomaly:
            awt_ref, ab_ref = refs[idx:idx + 2]; idx += 2
        meta_out_ref = refs[idx]; idx += 1
        anom_out_ref = refs[idx] if has_anomaly else None

        # ---- individual learners + concat, fully on-chip (no HBM meta_input) ------
        parts = []
        for l in range(num_learners):
            xl = x_refs[l][...]
            wl = lp_refs[2 * l][...]
            bl = lp_refs[2 * l + 1][...]
            parts.append(
                jnp.dot(xl.astype(wl.dtype), wl,
                        preferred_element_type=jnp.float32) + bl)
        meta_in = parts[0] if num_learners == 1 else jnp.concatenate(parts, axis=1)

        # ---- meta learner MLP: bf16/f32 MXU dots with f32 accumulation -------------
        w1 = w1_ref[...]
        h1 = jnp.dot(meta_in.astype(w1.dtype), w1,
                     preferred_element_type=jnp.float32) + b1_ref[...]
        h1 = jnp.maximum(h1, 0.0)

        w2 = w2_ref[...]
        h2 = jnp.dot(h1.astype(w2.dtype), w2,
                     preferred_element_type=jnp.float32) + b2_ref[...]
        h2 = jnp.maximum(h2, 0.0)

        # ---- layer 3 (N=2) off the MXU: broadcast-multiply + lane reduce ----------
        w3t = w3t_ref[...].astype(jnp.float32)                 # (OUT, H2)
        cols = [jnp.sum(h2 * w3t[j:j + 1, :], axis=1, keepdims=True)
                for j in range(w3t.shape[0])]
        meta = jnp.concatenate(cols, axis=1) + b3_ref[...]     # (tile, OUT) f32
        meta_out_ref[...] = meta.astype(meta_out_ref.dtype)

        # ---- fused nn.Module anomaly head: Linear(OUT,1) + sigmoid (VPU/XLU/EUP) ---
        if has_anomaly:
            awt = awt_ref[...].astype(jnp.float32)             # (1, OUT)
            pre = jnp.sum(meta * awt, axis=1, keepdims=True) + ab_ref[...]
            anom_out_ref[...] = jax.nn.sigmoid(pre).astype(anom_out_ref.dtype)

    return kernel


def elamd_fused_forward(xs, learner_params, meta_params, anomaly_params=None,
                        *, batch_tile=None, out_dtype=None):
    """Fused ELAMD forward: learner linears -> concat -> meta MLP -> (optional) anomaly head.

    xs:              list of (B, feat_i) arrays (one per individual learner).
    learner_params:  list of {"w": (feat_i, out_i), "b": (1, out_i)}.
    meta_params:     {"w1": (D,64), "b1": (1,64), "w2": (64,32), "b2": (1,32),
                      "w3": (32,2), "b3": (1,2)}   with D = sum(out_i).
    anomaly_params:  optional {"w": (2,1), "b": (1,1)} -> fused Linear+sigmoid head.
    Returns (meta_output (B,2), anomaly_output (B,1) or None).
    """
    num_learners = len(xs)
    assert num_learners >= 1 and num_learners == len(learner_params)
    B = xs[0].shape[0]
    for xi in xs:
        assert xi.shape[0] == B

    compute_dtype = xs[0].dtype
    if out_dtype is None:
        out_dtype = compute_dtype
    x_itemsize = jnp.dtype(compute_dtype).itemsize
    out_itemsize = jnp.dtype(out_dtype).itemsize

    # MXU weights in x.dtype (true bf16 MXU path when x is bf16); biases and the
    # off-MXU tail params stay f32 (they ride the f32 accumulator).
    lws = [jnp.asarray(p["w"], compute_dtype) for p in learner_params]
    lbs = [jnp.asarray(p["b"], jnp.float32) for p in learner_params]
    w1 = jnp.asarray(meta_params["w1"], compute_dtype)
    b1 = jnp.asarray(meta_params["b1"], jnp.float32)
    w2 = jnp.asarray(meta_params["w2"], compute_dtype)
    b2 = jnp.asarray(meta_params["b2"], jnp.float32)
    w3t = jnp.asarray(meta_params["w3"], jnp.float32).T       # (OUT, H2): sublane rows
    b3 = jnp.asarray(meta_params["b3"], jnp.float32)
    out_features = w3t.shape[0]
    h1_dim, h2_dim = w1.shape[1], w2.shape[1]

    has_anomaly = anomaly_params is not None
    if has_anomaly:
        awt = jnp.asarray(anomaly_params["w"], jnp.float32).T  # (1, OUT)
        ab = jnp.asarray(anomaly_params["b"], jnp.float32)     # (1, 1)

    feat_dims = [int(xi.shape[1]) for xi in xs]
    learner_outs = [int(p["w"].shape[1]) for p in learner_params]
    D = sum(learner_outs)

    params = []
    for lw, lb in zip(lws, lbs):
        params += [lw, lb]
    params += [w1, b1, w2, b2, w3t, b3]
    if has_anomaly:
        params += [awt, ab]
    weight_bytes = sum(int(p.size) * jnp.dtype(p.dtype).itemsize for p in params)

    # ---- batch-tile selection: VMEM-budgeted, generation-aware ------------------------
    vmem_cap = _vmem_capacity_bytes()
    if batch_tile is not None:
        tile = int(batch_tile)
    else:
        budget = max(int(vmem_cap * 0.45) - 2 * weight_bytes, 1 << 20)
        row_bytes = (2 * sum(feat_dims) * x_itemsize                 # double-buffered x tiles
                     + 2 * (out_features + 1) * out_itemsize          # double-buffered outputs
                     + 4 * (2 * D + h1_dim + h2_dim + out_features + 1))  # f32 intermediates
        tile = 8192 if vmem_cap >= (96 << 20) else 2048               # v5e/v6e vs v7x cap
        while tile > 128 and tile * row_bytes > budget:
            tile //= 2
        # v7x megacore: guarantee >= 2 "parallel" grid steps so both TensorCores get work.
        if B >= 1024 and pl.cdiv(B, tile) < 2:
            tile = pl.cdiv(B, 2)
    if tile >= B:
        tile = B                       # single full-batch block (equal-to-array-dim rule)
    else:
        tile = _round_up(max(tile, 8), 8)
    grid = pl.cdiv(B, tile)            # ragged last block: no host-side padding needed

    def stream(feat):
        return pl.BlockSpec((tile, feat), lambda i: (i, 0))

    def resident(arr):
        return pl.BlockSpec(arr.shape, lambda i: (0,) * arr.ndim)

    in_specs = [stream(f) for f in feat_dims] + [resident(p) for p in params]

    out_shapes = [jax.ShapeDtypeStruct((B, out_features), out_dtype)]
    out_specs = [pl.BlockSpec((tile, out_features), lambda i: (i, 0))]
    if has_anomaly:
        out_shapes.append(jax.ShapeDtypeStruct((B, 1), out_dtype))
        out_specs.append(pl.BlockSpec((tile, 1), lambda i: (i, 0)))

    flops = 2 * B * (sum(f * o for f, o in zip(feat_dims, learner_outs))
                     + D * h1_dim + h1_dim * h2_dim + h2_dim * out_features
                     + (out_features if has_anomaly else 0))
    bytes_accessed = (sum(int(xi.size) * x_itemsize for xi in xs) + weight_bytes
                      + B * (out_features + (1 if has_anomaly else 0)) * out_itemsize)
    cost = pl.CostEstimate(flops=int(flops),
                           transcendentals=int(B if has_anomaly else 0),
                           bytes_accessed=int(bytes_accessed))

    outs = pl.pallas_call(
        _make_kernel(num_learners, has_anomaly),
        out_shape=tuple(out_shapes),
        grid_spec=pltpu.PrefetchScalarGridSpec(
            num_scalar_prefetch=0,
            grid=(grid,),
            in_specs=in_specs,
            out_specs=tuple(out_specs),
        ),
        compiler_params=pltpu.CompilerParams(
            dimension_semantics=("parallel",),
            vmem_limit_bytes=int(max(32 << 20, min(int(vmem_cap * 3 // 4), 96 << 20))),
        ),
        cost_estimate=cost,
    )(*xs, *params)

    if has_anomaly:
        return outs[0], outs[1]
    return outs[0], None


# --------------------------- ELAMD module-level wrapper --------------------------------

def elamd_forward(xs, learner_params, meta_params, anomaly_detector=None, *, batch_tile=None):
    """ELAMD_AnomalyDetection.forward.

    anomaly_detector:
      * dict {"w": (2,1), "b": (1,1)}  -> fused nn.Module Linear+sigmoid head (in-kernel).
      * callable                       -> applied to meta_output outside the kernel.
      * None                           -> no head (sklearn .predict branch not translatable).
    """
    # TODO(synk): RandomForestWrapper individual learners (sklearn predict_proba) have no
    # Pallas equivalent; learners are modeled as linear scoring heads here.
    if isinstance(anomaly_detector, dict):
        return elamd_fused_forward(xs, learner_params, meta_params, anomaly_detector,
                                   batch_tile=batch_tile)
    meta_output, _ = elamd_fused_forward(xs, learner_params, meta_params, None,
                                         batch_tile=batch_tile)
    if callable(anomaly_detector):
        anomaly_output = anomaly_detector(meta_output)
    else:
        # TODO(synk): sklearn anomaly_detector.predict (data-dependent tree traversal on host)
        # has no clean Pallas equivalent.
        anomaly_output = None
    return meta_output, anomaly_output


# --------------------------- params / pure-JAX reference -------------------------------

def init_params(key, input_size):
    """Deterministic init mimicking nn.Linear default (uniform +-1/sqrt(fan_in))."""
    dims = [(input_size, _H1), (_H1, _H2), (_H2, _OUT)]
    params = {}
    for idx, (fan_in, fan_out) in enumerate(dims, start=1):
        key, kw, kb = jax.random.split(key, 3)
        bound = 1.0 / jnp.sqrt(jnp.float32(fan_in))
        params[f"w{idx}"] = jax.random.uniform(
            kw, (fan_in, fan_out), jnp.float32, minval=-bound, maxval=bound)
        params[f"b{idx}"] = jax.random.uniform(
            kb, (1, fan_out), jnp.float32, minval=-bound, maxval=bound)
    return params


def reference_forward(x, params):
    h1 = jnp.maximum(x @ params["w1"] + params["b1"], 0.0)
    h2 = jnp.maximum(h1 @ params["w2"] + params["b2"], 0.0)
    return h2 @ params["w3"] + params["b3"]


if __name__ == "__main__":
    root = jax.random.PRNGKey(0)
    k_meta, k_anom, k_learners, k_big = jax.random.split(root, 4)

    batch = 8
    num_learners, feat_dim, learner_out = 4, 16, 8
    meta_in_dim = num_learners * learner_out  # 32

    # Individual-learner inputs (the list `x` of the PyTorch module) and linear params.
    xs, learner_params = [], []
    kk = k_learners
    for _ in range(num_learners):
        kk, kx, kw, kb = jax.random.split(kk, 4)
        xs.append(jax.random.normal(kx, (batch, feat_dim), jnp.float32))
        bound = 1.0 / jnp.sqrt(jnp.float32(feat_dim))
        learner_params.append({
            "w": jax.random.uniform(kw, (feat_dim, learner_out), jnp.float32,
                                    minval=-bound, maxval=bound),
            "b": jax.random.uniform(kb, (1, learner_out), jnp.float32,
                                    minval=-bound, maxval=bound),
        })

    meta_params = init_params(k_meta, meta_in_dim)

    # nn.Module-style anomaly detector: Linear(2 -> 1) + sigmoid, fused in-kernel.
    ka_w, ka_b = jax.random.split(k_anom)
    anomaly_params = {
        "w": jax.random.uniform(ka_w, (2, 1), jnp.float32, minval=-0.5, maxval=0.5),
        "b": jax.random.uniform(ka_b, (1, 1), jnp.float32, minval=-0.5, maxval=0.5),
    }

    meta_out, anomaly_out = elamd_forward(xs, learner_params, meta_params, anomaly_params)
    meta_out = jax.block_until_ready(meta_out)
    anomaly_out = jax.block_until_ready(anomaly_out)

    meta_input_ref = jnp.concatenate(
        [xi @ p["w"] + p["b"] for xi, p in zip(xs, learner_params)], axis=1)
    meta_ref = reference_forward(meta_input_ref, meta_params)
    anom_ref = jax.nn.sigmoid(meta_ref @ anomaly_params["w"] + anomaly_params["b"])
    assert meta_out.shape == (batch, 2), meta_out.shape
    assert anomaly_out.shape == (batch, 1), anomaly_out.shape
    assert jnp.allclose(meta_out, meta_ref, atol=2e-5, rtol=1e-4), "meta_output mismatch"
    assert jnp.allclose(anomaly_out, anom_ref, atol=2e-5, rtol=1e-4), "anomaly_output mismatch"

    # Ragged multi-step grid: B=100 with an explicit 32-row tile -> 4 grid steps, masked tail.
    big_b = 100
    xs_big, kk = [], k_big
    for _ in range(num_learners):
        kk, kx = jax.random.split(kk)
        xs_big.append(jax.random.normal(kx, (big_b, feat_dim), jnp.float32))
    meta_big, anom_big = elamd_fused_forward(xs_big, learner_params, meta_params,
                                             anomaly_params, batch_tile=32)
    meta_big = jax.block_until_ready(meta_big)
    anom_big = jax.block_until_ready(anom_big)
    mi_big = jnp.concatenate([xi @ p["w"] + p["b"] for xi, p in zip(xs_big, learner_params)],
                             axis=1)
    ref_big = reference_forward(mi_big, meta_params)
    anom_ref_big = jax.nn.sigmoid(ref_big @ anomaly_params["w"] + anomaly_params["b"])
    assert meta_big.shape == (big_b, 2), meta_big.shape
    assert jnp.allclose(meta_big, ref_big, atol=2e-5, rtol=1e-4), "ragged-grid meta mismatch"
    assert jnp.allclose(anom_big, anom_ref_big, atol=2e-5, rtol=1e-4), "ragged-grid anomaly mismatch"

    # bf16 smoke test: weights get cast to x.dtype in the wrapper -> true bf16 MXU path.
    xs_bf16 = [xi.astype(jnp.bfloat16) for xi in xs_big]
    meta_bf16, anom_bf16 = elamd_fused_forward(xs_bf16, learner_params, meta_params,
                                               anomaly_params)
    meta_bf16 = jax.block_until_ready(meta_bf16)
    assert meta_bf16.shape == (big_b, 2) and meta_bf16.dtype == jnp.bfloat16
    assert bool(jnp.isfinite(meta_bf16.astype(jnp.float32)).all())

    print("KERNEL_OK")
</pallas_src>

<mosaic_0001>
module attributes {stable_mosaic.version = 11 : i64} {
  func.func @kernel(%arg0: i32, %arg1: memref<8x16xf32, #tpu.memory_space<vmem>>, %arg2: memref<8x16xf32, #tpu.memory_space<vmem>>, %arg3: memref<8x16xf32, #tpu.memory_space<vmem>>, %arg4: memref<8x16xf32, #tpu.memory_space<vmem>>, %arg5: memref<16x8xf32, #tpu.memory_space<vmem>>, %arg6: memref<1x8xf32, #tpu.memory_space<vmem>>, %arg7: memref<16x8xf32, #tpu.memory_space<vmem>>, %arg8: memref<1x8xf32, #tpu.memory_space<vmem>>, %arg9: memref<16x8xf32, #tpu.memory_space<vmem>>, %arg10: memref<1x8xf32, #tpu.memory_space<vmem>>, %arg11: memref<16x8xf32, #tpu.memory_space<vmem>>, %arg12: memref<1x8xf32, #tpu.memory_space<vmem>>, %arg13: memref<32x64xf32, #tpu.memory_space<vmem>>, %arg14: memref<1x64xf32, #tpu.memory_space<vmem>>, %arg15: memref<64x32xf32, #tpu.memory_space<vmem>>, %arg16: memref<1x32xf32, #tpu.memory_space<vmem>>, %arg17: memref<2x32xf32, #tpu.memory_space<vmem>>, %arg18: memref<1x2xf32, #tpu.memory_space<vmem>>, %arg19: memref<1x2xf32, #tpu.memory_space<vmem>>, %arg20: memref<1x1xf32, #tpu.memory_space<vmem>>, %arg21: memref<8x2xf32, #tpu.memory_space<vmem>>, %arg22: memref<8x1xf32, #tpu.memory_space<vmem>>) attributes {dimension_semantics = [#tpu.dimension_semantics<parallel>], iteration_bounds = array<i64: 1>, scalar_prefetch = 0 : i64, scratch_operands = 0 : i64, tpu.core_type = #tpu.core_type<tc>, window_params = [{transform_indices = @transform_0, window_bounds = array<i64: 8, 16>}, {transform_indices = @transform_1, window_bounds = array<i64: 8, 16>}, {transform_indices = @transform_2, window_bounds = array<i64: 8, 16>}, {transform_indices = @transform_3, window_bounds = array<i64: 8, 16>}, {pipeline_mode = #tpu.pipeline_mode<synchronous>, transform_indices = @transform_4, window_bounds = array<i64: 16, 8>}, {pipeline_mode = #tpu.pipeline_mode<synchronous>, transform_indices = @transform_5, window_bounds = array<i64: 1, 8>}, {pipeline_mode = #tpu.pipeline_mode<synchronous>, transform_indices = @transform_6, window_bounds = array<i64: 16, 8>}, {pipeline_mode = #tpu.pipeline_mode<synchronous>, transform_indices = @transform_7, window_bounds = array<i64: 1, 8>}, {pipeline_mode = #tpu.pipeline_mode<synchronous>, transform_indices = @transform_8, window_bounds = array<i64: 16, 8>}, {pipeline_mode = #tpu.pipeline_mode<synchronous>, transform_indices = @transform_9, window_bounds = array<i64: 1, 8>}, {pipeline_mode = #tpu.pipeline_mode<synchronous>, transform_indices = @transform_10, window_bounds = array<i64: 16, 8>}, {pipeline_mode = #tpu.pipeline_mode<synchronous>, transform_indices = @transform_11, window_bounds = array<i64: 1, 8>}, {pipeline_mode = #tpu.pipeline_mode<synchronous>, transform_indices = @transform_12, window_bounds = array<i64: 32, 64>}, {pipeline_mode = #tpu.pipeline_mode<synchronous>, transform_indices = @transform_13, window_bounds = array<i64: 1, 64>}, {pipeline_mode = #tpu.pipeline_mode<synchronous>, transform_indices = @transform_14, window_bounds = array<i64: 64, 32>}, {pipeline_mode = #tpu.pipeline_mode<synchronous>, transform_indices = @transform_15, window_bounds = array<i64: 1, 32>}, {pipeline_mode = #tpu.pipeline_mode<synchronous>, transform_indices = @transform_16, window_bounds = array<i64: 2, 32>}, {pipeline_mode = #tpu.pipeline_mode<synchronous>, transform_indices = @transform_17, window_bounds = array<i64: 1, 2>}, {pipeline_mode = #tpu.pipeline_mode<synchronous>, transform_indices = @transform_18, window_bounds = array<i64: 1, 2>}, {pipeline_mode = #tpu.pipeline_mode<synchronous>, transform_indices = @transform_19, window_bounds = array<i64: 1, 1>}, {transform_indices = @transform_20, window_bounds = array<i64: 8, 2>}, {transform_indices = @transform_21, window_bounds = array<i64: 8, 1>}]} {
    %c0 = arith.constant 0 : index
    %c0_0 = arith.constant 0 : index
    %0 = vector.load %arg1[%c0, %c0_0] : memref<8x16xf32, #tpu.memory_space<vmem>>, vector<8x16xf32>
    %c0_1 = arith.constant 0 : index
    %c0_2 = arith.constant 0 : index
    %1 = vector.load %arg5[%c0_1, %c0_2] : memref<16x8xf32, #tpu.memory_space<vmem>>, vector<16x8xf32>
    %c0_3 = arith.constant 0 : index
    %c0_4 = arith.constant 0 : index
    %2 = vector.load %arg6[%c0_3, %c0_4] : memref<1x8xf32, #tpu.memory_space<vmem>>, vector<1x8xf32>
    %cst = arith.constant dense<0.000000e+00> : vector<8x8xf32>
    %3 = tpu.matmul %0, %1, %cst {dimension_numbers = #tpu.dot_dimension_numbers<[1], [0], [0], [1], [0, 0, 1, 1], [], []>} : vector<8x16xf32>, vector<16x8xf32>, vector<8x8xf32> -> vector<8x8xf32>
    %4 = vector.broadcast %2 : vector<1x8xf32> to vector<8x8xf32>
    %5 = arith.addf %3, %4 : vector<8x8xf32>
    %c0_5 = arith.constant 0 : index
    %c0_6 = arith.constant 0 : index
    %6 = vector.load %arg2[%c0_5, %c0_6] : memref<8x16xf32, #tpu.memory_space<vmem>>, vector<8x16xf32>
    %c0_7 = arith.constant 0 : index
    %c0_8 = arith.constant 0 : index
    %7 = vector.load %arg7[%c0_7, %c0_8] : memref<16x8xf32, #tpu.memory_space<vmem>>, vector<16x8xf32>
    %c0_9 = arith.constant 0 : index
    %c0_10 = arith.constant 0 : index
    %8 = vector.load %arg8[%c0_9, %c0_10] : memref<1x8xf32, #tpu.memory_space<vmem>>, vector<1x8xf32>
    %cst_11 = arith.constant dense<0.000000e+00> : vector<8x8xf32>
    %9 = tpu.matmul %6, %7, %cst_11 {dimension_numbers = #tpu.dot_dimension_numbers<[1], [0], [0], [1], [0, 0, 1, 1], [], []>} : vector<8x16xf32>, vector<16x8xf32>, vector<8x8xf32> -> vector<8x8xf32>
    %10 = vector.broadcast %8 : vector<1x8xf32> to vector<8x8xf32>
    %11 = arith.addf %9, %10 : vector<8x8xf32>
    %c0_12 = arith.constant 0 : index
    %c0_13 = arith.constant 0 : index
    %12 = vector.load %arg3[%c0_12, %c0_13] : memref<8x16xf32, #tpu.memory_space<vmem>>, vector<8x16xf32>
    %c0_14 = arith.constant 0 : index
    %c0_15 = arith.constant 0 : index
    %13 = vector.load %arg9[%c0_14, %c0_15] : memref<16x8xf32, #tpu.memory_space<vmem>>, vector<16x8xf32>
    %c0_16 = arith.constant 0 : index
    %c0_17 = arith.constant 0 : index
    %14 = vector.load %arg10[%c0_16, %c0_17] : memref<1x8xf32, #tpu.memory_space<vmem>>, vector<1x8xf32>
    %cst_18 = arith.constant dense<0.000000e+00> : vector<8x8xf32>
    %15 = tpu.matmul %12, %13, %cst_18 {dimension_numbers = #tpu.dot_dimension_numbers<[1], [0], [0], [1], [0, 0, 1, 1], [], []>} : vector<8x16xf32>, vector<16x8xf32>, vector<8x8xf32> -> vector<8x8xf32>
    %16 = vector.broadcast %14 : vector<1x8xf32> to vector<8x8xf32>
    %17 = arith.addf %15, %16 : vector<8x8xf32>
    %c0_19 = arith.constant 0 : index
    %c0_20 = arith.constant 0 : index
    %18 = vector.load %arg4[%c0_19, %c0_20] : memref<8x16xf32, #tpu.memory_space<vmem>>, vector<8x16xf32>
    %c0_21 = arith.constant 0 : index
    %c0_22 = arith.constant 0 : index
    %19 = vector.load %arg11[%c0_21, %c0_22] : memref<16x8xf32, #tpu.memory_space<vmem>>, vector<16x8xf32>
    %c0_23 = arith.constant 0 : index
    %c0_24 = arith.constant 0 : index
    %20 = vector.load %arg12[%c0_23, %c0_24] : memref<1x8xf32, #tpu.memory_space<vmem>>, vector<1x8xf32>
    %cst_25 = arith.constant dense<0.000000e+00> : vector<8x8xf32>
    %21 = tpu.matmul %18, %19, %cst_25 {dimension_numbers = #tpu.dot_dimension_numbers<[1], [0], [0], [1], [0, 0, 1, 1], [], []>} : vector<8x16xf32>, vector<16x8xf32>, vector<8x8xf32> -> vector<8x8xf32>
    %22 = vector.broadcast %20 : vector<1x8xf32> to vector<8x8xf32>
    %23 = arith.addf %21, %22 : vector<8x8xf32>
    %24 = tpu.concatenate %5, %11, %17, %23 in 1 : vector<8x8xf32>, vector<8x8xf32>, vector<8x8xf32>, vector<8x8xf32> -> vector<8x32xf32>
    %c0_26 = arith.constant 0 : index
    %c0_27 = arith.constant 0 : index
    %25 = vector.load %arg13[%c0_26, %c0_27] : memref<32x64xf32, #tpu.memory_space<vmem>>, vector<32x64xf32>
    %cst_28 = arith.constant dense<0.000000e+00> : vector<8x64xf32>
    %26 = tpu.matmul %24, %25, %cst_28 {dimension_numbers = #tpu.dot_dimension_numbers<[1], [0], [0], [1], [0, 0, 1, 1], [], []>} : vector<8x32xf32>, vector<32x64xf32>, vector<8x64xf32> -> vector<8x64xf32>
    %c0_29 = arith.constant 0 : index
    %c0_30 = arith.constant 0 : index
    %27 = vector.load %arg14[%c0_29, %c0_30] : memref<1x64xf32, #tpu.memory_space<vmem>>, vector<1x64xf32>
    %28 = vector.broadcast %27 : vector<1x64xf32> to vector<8x64xf32>
    %29 = arith.addf %26, %28 : vector<8x64xf32>
    %cst_31 = arith.constant 0.000000e+00 : f32
    %30 = vector.broadcast %cst_31 : f32 to vector<8x64xf32>
    %31 = arith.maximumf %29, %30 : vector<8x64xf32>
    %c0_32 = arith.constant 0 : index
    %c0_33 = arith.constant 0 : index
    %32 = vector.load %arg15[%c0_32, %c0_33] : memref<64x32xf32, #tpu.memory_space<vmem>>, vector<64x32xf32>
    %cst_34 = arith.constant dense<0.000000e+00> : vector<8x32xf32>
    %33 = tpu.matmul %31, %32, %cst_34 {dimension_numbers = #tpu.dot_dimension_numbers<[1], [0], [0], [1], [0, 0, 1, 1], [], []>} : vector<8x64xf32>, vector<64x32xf32>, vector<8x32xf32> -> vector<8x32xf32>
    %c0_35 = arith.constant 0 : index
    %c0_36 = arith.constant 0 : index
    %34 = vector.load %arg16[%c0_35, %c0_36] : memref<1x32xf32, #tpu.memory_space<vmem>>, vector<1x32xf32>
    %35 = vector.broadcast %34 : vector<1x32xf32> to vector<8x32xf32>
    %36 = arith.addf %33, %35 : vector<8x32xf32>
    %cst_37 = arith.constant 0.000000e+00 : f32
    %37 = vector.broadcast %cst_37 : f32 to vector<8x32xf32>
    %38 = arith.maximumf %36, %37 : vector<8x32xf32>
    %c0_38 = arith.constant 0 : index
    %c0_39 = arith.constant 0 : index
    %39 = vector.load %arg17[%c0_38, %c0_39] : memref<2x32xf32, #tpu.memory_space<vmem>>, vector<2x32xf32>
    %40 = vector.extract_strided_slice %39 {offsets = [0, 0], sizes = [1, 32], strides = [1, 1]} : vector<2x32xf32> to vector<1x32xf32>
    %41 = vector.broadcast %40 : vector<1x32xf32> to vector<8x32xf32>
    %42 = arith.mulf %38, %41 : vector<8x32xf32>
    %cst_40 = arith.constant dense<0.000000e+00> : vector<8xf32>
    %43 = vector.multi_reduction <add>, %42, %cst_40 [1] : vector<8x32xf32> to vector<8xf32>
    %44 = vector.shape_cast %43 : vector<8xf32> to vector<8x1xf32>
    %45 = vector.extract_strided_slice %39 {offsets = [1, 0], sizes = [1, 32], strides = [1, 1]} : vector<2x32xf32> to vector<1x32xf32>
    %46 = vector.broadcast %45 : vector<1x32xf32> to vector<8x32xf32>
    %47 = arith.mulf %38, %46 : vector<8x32xf32>
    %cst_41 = arith.constant dense<0.000000e+00> : vector<8xf32>
    %48 = vector.multi_reduction <add>, %47, %cst_41 [1] : vector<8x32xf32> to vector<8xf32>
    %49 = vector.shape_cast %48 : vector<8xf32> to vector<8x1xf32>
    %50 = tpu.concatenate %44, %49 in 1 : vector<8x1xf32>, vector<8x1xf32> -> vector<8x2xf32>
    %c0_42 = arith.constant 0 : index
    %c0_43 = arith.constant 0 : index
    %51 = vector.load %arg18[%c0_42, %c0_43] : memref<1x2xf32, #tpu.memory_space<vmem>>, vector<1x2xf32>
    %52 = vector.broadcast %51 : vector<1x2xf32> to vector<8x2xf32>
    %53 = arith.addf %50, %52 : vector<8x2xf32>
    %c0_44 = arith.constant 0 : index
    %c0_45 = arith.constant 0 : index
    %54 = vector.load %arg21[%c0_44, %c0_45] : memref<8x2xf32, #tpu.memory_space<vmem>>, vector<8x2xf32>
    tpu.vector_store %arg21[%c0_44, %c0_45], %53 {strides = array<i32>} : memref<8x2xf32, #tpu.memory_space<vmem>>, vector<8x2xf32>,
    %c0_46 = arith.constant 0 : index
    %c0_47 = arith.constant 0 : index
    %55 = vector.load %arg19[%c0_46, %c0_47] : memref<1x2xf32, #tpu.memory_space<vmem>>, vector<1x2xf32>
    %56 = vector.broadcast %55 : vector<1x2xf32> to vector<8x2xf32>
    %57 = arith.mulf %53, %56 : vector<8x2xf32>
    %cst_48 = arith.constant dense<0.000000e+00> : vector<8xf32>
    %58 = vector.multi_reduction <add>, %57, %cst_48 [1] : vector<8x2xf32> to vector<8xf32>
    %59 = vector.shape_cast %58 : vector<8xf32> to vector<8x1xf32>
    %c0_49 = arith.constant 0 : index
    %c0_50 = arith.constant 0 : index
    %60 = vector.load %arg20[%c0_49, %c0_50] : memref<1x1xf32, #tpu.memory_space<vmem>>, vector<1x1xf32>
    %61 = vector.broadcast %60 : vector<1x1xf32> to vector<8x1xf32>
    %62 = arith.addf %59, %61 : vector<8x1xf32>
    %63 = arith.negf %62 : vector<8x1xf32>
    %64 = math.exp %63 : vector<8x1xf32>
    %cst_51 = arith.constant 1.000000e+00 : f32
    %65 = vector.broadcast %cst_51 : f32 to vector<8x1xf32>
    %66 = arith.addf %65, %64 : vector<8x1xf32>
    %67 = arith.divf %65, %66 : vector<8x1xf32>
    %c0_52 = arith.constant 0 : index
    %c0_53 = arith.constant 0 : index
    %68 = vector.load %arg22[%c0_52, %c0_53] : memref<8x1xf32, #tpu.memory_space<vmem>>, vector<8x1xf32>
    tpu.vector_store %arg22[%c0_52, %c0_53], %67 {strides = array<i32>} : memref<8x1xf32, #tpu.memory_space<vmem>>, vector<8x1xf32>,
    return
  }
  func.func @transform_0(%arg0: i32) -> (i32, i32) {
    %c0_i32 = arith.constant 0 : i32
    %c0_i32_0 = arith.constant 0 : i32
    return %arg0, %c0_i32 : i32, i32
  }
  func.func @transform_1(%arg0: i32) -> (i32, i32) {
    %c0_i32 = arith.constant 0 : i32
    %c0_i32_0 = arith.constant 0 : i32
    return %arg0, %c0_i32 : i32, i32
  }
  func.func @transform_2(%arg0: i32) -> (i32, i32) {
    %c0_i32 = arith.constant 0 : i32
    %c0_i32_0 = arith.constant 0 : i32
    return %arg0, %c0_i32 : i32, i32
  }
  func.func @transform_3(%arg0: i32) -> (i32, i32) {
    %c0_i32 = arith.constant 0 : i32
    %c0_i32_0 = arith.constant 0 : i32
    return %arg0, %c0_i32 : i32, i32
  }
  func.func @transform_4(%arg0: i32) -> (i32, i32) {
    %c0_i32 = arith.constant 0 : i32
    %c0_i32_0 = arith.constant 0 : i32
    %c0_i32_1 = arith.constant 0 : i32
    return %c0_i32, %c0_i32_0 : i32, i32
  }
  func.func @transform_5(%arg0: i32) -> (i32, i32) {
    %c0_i32 = arith.constant 0 : i32
    %c0_i32_0 = arith.constant 0 : i32
    %c0_i32_1 = arith.constant 0 : i32
    return %c0_i32, %c0_i32_0 : i32, i32
  }
  func.func @transform_6(%arg0: i32) -> (i32, i32) {
    %c0_i32 = arith.constant 0 : i32
    %c0_i32_0 = arith.constant 0 : i32
    %c0_i32_1 = arith.constant 0 : i32
    return %c0_i32, %c0_i32_0 : i32, i32
  }
  func.func @transform_7(%arg0: i32) -> (i32, i32) {
    %c0_i32 = arith.constant 0 : i32
    %c0_i32_0 = arith.constant 0 : i32
    %c0_i32_1 = arith.constant 0 : i32
    return %c0_i32, %c0_i32_0 : i32, i32
  }
  func.func @transform_8(%arg0: i32) -> (i32, i32) {
    %c0_i32 = arith.constant 0 : i32
    %c0_i32_0 = arith.constant 0 : i32
    %c0_i32_1 = arith.constant 0 : i32
    return %c0_i32, %c0_i32_0 : i32, i32
  }
  func.func @transform_9(%arg0: i32) -> (i32, i32) {
    %c0_i32 = arith.constant 0 : i32
    %c0_i32_0 = arith.constant 0 : i32
    %c0_i32_1 = arith.constant 0 : i32
    return %c0_i32, %c0_i32_0 : i32, i32
  }
  func.func @transform_10(%arg0: i32) -> (i32, i32) {
    %c0_i32 = arith.constant 0 : i32
    %c0_i32_0 = arith.constant 0 : i32
    %c0_i32_1 = arith.constant 0 : i32
    return %c0_i32, %c0_i32_0 : i32, i32
  }
  func.func @transform_11(%arg0: i32) -> (i32, i32) {
    %c0_i32 = arith.constant 0 : i32
    %c0_i32_0 = arith.constant 0 : i32
    %c0_i32_1 = arith.constant 0 : i32
    return %c0_i32, %c0_i32_0 : i32, i32
  }
  func.func @transform_12(%arg0: i32) -> (i32, i32) {
    %c0_i32 = arith.constant 0 : i32
    %c0_i32_0 = arith.constant 0 : i32
    %c0_i32_1 = arith.constant 0 : i32
    return %c0_i32, %c0_i32_0 : i32, i32
  }
  func.func @transform_13(%arg0: i32) -> (i32, i32) {
    %c0_i32 = arith.constant 0 : i32
    %c0_i32_0 = arith.constant 0 : i32
    %c0_i32_1 = arith.constant 0 : i32
    return %c0_i32, %c0_i32_0 : i32, i32
  }
  func.func @transform_14(%arg0: i32) -> (i32, i32) {
    %c0_i32 = arith.constant 0 : i32
    %c0_i32_0 = arith.constant 0 : i32
    %c0_i32_1 = arith.constant 0 : i32
    return %c0_i32, %c0_i32_0 : i32, i32
  }
  func.func @transform_15(%arg0: i32) -> (i32, i32) {
    %c0_i32 = arith.constant 0 : i32
    %c0_i32_0 = arith.constant 0 : i32
    %c0_i32_1 = arith.constant 0 : i32
    return %c0_i32, %c0_i32_0 : i32, i32
  }
  func.func @transform_16(%arg0: i32) -> (i32, i32) {
    %c0_i32 = arith.constant 0 : i32
    %c0_i32_0 = arith.constant 0 : i32
    %c0_i32_1 = arith.constant 0 : i32
    return %c0_i32, %c0_i32_0 : i32, i32
  }
  func.func @transform_17(%arg0: i32) -> (i32, i32) {
    %c0_i32 = arith.constant 0 : i32
    %c0_i32_0 = arith.constant 0 : i32
    %c0_i32_1 = arith.constant 0 : i32
    return %c0_i32, %c0_i32_0 : i32, i32
  }
  func.func @transform_18(%arg0: i32) -> (i32, i32) {
    %c0_i32 = arith.constant 0 : i32
    %c0_i32_0 = arith.constant 0 : i32
    %c0_i32_1 = arith.constant 0 : i32
    return %c0_i32, %c0_i32_0 : i32, i32
  }
  func.func @transform_19(%arg0: i32) -> (i32, i32) {
    %c0_i32 = arith.constant 0 : i32
    %c0_i32_0 = arith.constant 0 : i32
    %c0_i32_1 = arith.constant 0 : i32
    return %c0_i32, %c0_i32_0 : i32, i32
  }
  func.func @transform_20(%arg0: i32) -> (i32, i32) {
    %c0_i32 = arith.constant 0 : i32
    %c0_i32_0 = arith.constant 0 : i32
    return %arg0, %c0_i32 : i32, i32
  }
  func.func @transform_21(%arg0: i32) -> (i32, i32) {
    %c0_i32 = arith.constant 0 : i32
    %c0_i32_0 = arith.constant 0 : i32
    return %arg0, %c0_i32 : i32, i32
  }
}

</mosaic_0001>

<llo_original>
// kernel: tpu_custom_call.1
$region0: #{tpu_custom_call.1}
  #allocation0 [shape = 'u32[]', space=smem, size = 0x4, offset = 0x4, fixed_abs, tag = 'smem constant byte address 0x4 - core index']
  #allocation1 [shape = 'u32[144,128]{1,0:T(1,128)}', space=vmem, size = 0x12000, scoped, tag = 'internal scratch']
  #allocation2 [shape = 'f32[1,1]{1,0:T(1,128)S(1)}', space=vmem, size = 0x200, scoped, tag = 'scoped memory for tpu_custom_call.1']
  %s0 = inlined_call_operand.vmem [shape: f32[8,16], index: 0, kind: input, shape index: {}]
  %s1 = inlined_call_operand.vmem [shape: f32[8,16], index: 1, kind: input, shape index: {}]
  %s2 = inlined_call_operand.vmem [shape: f32[8,16], index: 2, kind: input, shape index: {}]
  %s3 = inlined_call_operand.vmem [shape: f32[8,16], index: 3, kind: input, shape index: {}]
  %s4 = inlined_call_operand.vmem [shape: f32[16,8], index: 4, kind: input, shape index: {}]
  %s5 = inlined_call_operand.vmem [shape: f32[1,8], index: 5, kind: input, shape index: {}]
  %s6 = inlined_call_operand.vmem [shape: f32[16,8], index: 6, kind: input, shape index: {}]
  %s7 = inlined_call_operand.vmem [shape: f32[1,8], index: 7, kind: input, shape index: {}]
  %s8 = inlined_call_operand.vmem [shape: f32[16,8], index: 8, kind: input, shape index: {}]
  %s9 = inlined_call_operand.vmem [shape: f32[1,8], index: 9, kind: input, shape index: {}]
  %s10 = inlined_call_operand.vmem [shape: f32[16,8], index: 10, kind: input, shape index: {}]
  %s11 = inlined_call_operand.vmem [shape: f32[1,8], index: 11, kind: input, shape index: {}]
  %s12 = inlined_call_operand.vmem [shape: f32[32,64], index: 12, kind: input, shape index: {}]
  %s13 = inlined_call_operand.vmem [shape: f32[1,64], index: 13, kind: input, shape index: {}]
  %s14 = inlined_call_operand.vmem [shape: f32[64,32], index: 14, kind: input, shape index: {}]
  %s15 = inlined_call_operand.vmem [shape: f32[1,32], index: 15, kind: input, shape index: {}]
  %s16 = inlined_call_operand.vmem [shape: f32[2,32], index: 16, kind: input, shape index: {}]
  %s17 = inlined_call_operand.vmem [shape: f32[1,2], index: 17, kind: input, shape index: {}]
  %s18 = inlined_call_operand.vmem [shape: f32[1,2], index: 18, kind: input, shape index: {}]
  %s19 = inlined_call_operand.<no memory space> [shape: f32[1,1], index: 19, kind: input, shape index: {}]
  %s20 = inlined_call_operand.vmem [shape: f32[8,2], index: 20, kind: output, shape index: {0}]
  %s21 = inlined_call_operand.vmem [shape: f32[8,1], index: 21, kind: output, shape index: {1}]
  %22 = xla_tuple %s20, %s21
  %s23 = sld [smem:[#allocation0]]
  $region98: #{tpu_custom_call.1} parent=0
    _
  %s25 = ssub.s32 1, %s23
  %s26 = scalar_select 0, %s25, %s23
  %v27 = vstv %s19
  %28 = vst [vmem:[#allocation2] sm:$0x1] %v27
  // Predicated region
  $region2: #{tpu_custom_call.1} parent=0 // pred_check
    _
  $region3: #{tpu_custom_call.1} parent=0 // pred_check_branch
    %30 = sbr.rel (0) target = $region5
  $region4: #{tpu_custom_call.1} parent=0 // pred_region
    _
  $region5: #{tpu_custom_call.1} parent=0 // pred_fallthru
    _
  // Predicated region
  $region6: #{tpu_custom_call.1} parent=0 // pred_check
    _
  $region7: #{tpu_custom_call.1} parent=0 // pred_check_branch
    %32 = sbr.rel (0) target = $region9
  $region8: #{tpu_custom_call.1} parent=0 // pred_region
    _
  $region9: #{tpu_custom_call.1} parent=0 // pred_fallthru
    _
  // Predicated region
  $region10: #{tpu_custom_call.1} parent=0 // pred_check
    _
  $region11: #{tpu_custom_call.1} parent=0 // pred_check_branch
    %34 = sbr.rel (0) target = $region13
  $region12: #{tpu_custom_call.1} parent=0 // pred_region
    _
  $region13: #{tpu_custom_call.1} parent=0 // pred_fallthru
    _
  // Predicated region
  $region14: #{tpu_custom_call.1} parent=0 // pred_check
    _
  $region15: #{tpu_custom_call.1} parent=0 // pred_check_branch
    %36 = sbr.rel (0) target = $region17
  $region16: #{tpu_custom_call.1} parent=0 // pred_region
    _
  $region17: #{tpu_custom_call.1} parent=0 // pred_fallthru
    _
  // Predicated region
  $region18: #{tpu_custom_call.1} parent=0 // pred_check
    _
  $region19: #{tpu_custom_call.1} parent=0 // pred_check_branch
    %38 = sbr.rel (0) target = $region21
  $region20: #{tpu_custom_call.1} parent=0 // pred_region
    _
  $region21: #{tpu_custom_call.1} parent=0 // pred_fallthru
    _
  // Predicated region
  $region22: #{tpu_custom_call.1} parent=0 // pred_check
    _
  $region23: #{tpu_custom_call.1} parent=0 // pred_check_branch
    %40 = sbr.rel (0) target = $region25
  $region24: #{tpu_custom_call.1} parent=0 // pred_region
    _
  $region25: #{tpu_custom_call.1} parent=0 // pred_fallthru
    _
  // Predicated region
  $region26: #{tpu_custom_call.1} parent=0 // pred_check
    _
  $region27: #{tpu_custom_call.1} parent=0 // pred_check_branch
    %42 = sbr.rel (0) target = $region29
  $region28: #{tpu_custom_call.1} parent=0 // pred_region
    _
  $region29: #{tpu_custom_call.1} parent=0 // pred_fallthru
    _
  // Predicated region
  $region30: #{tpu_custom_call.1} parent=0 // pred_check
    _
  $region31: #{tpu_custom_call.1} parent=0 // pred_check_branch
    %44 = sbr.rel (0) target = $region33
  $region32: #{tpu_custom_call.1} parent=0 // pred_region
    _
  $region33: #{tpu_custom_call.1} parent=0 // pred_fallthru
    _
  // Predicated region
  $region34: #{tpu_custom_call.1} parent=0 // pred_check
    _
  $region35: #{tpu_custom_call.1} parent=0 // pred_check_branch
    %46 = sbr.rel (0) target = $region37
  $region36: #{tpu_custom_call.1} parent=0 // pred_region
    _
  $region37: #{tpu_custom_call.1} parent=0 // pred_fallthru
    _
  // Predicated region
  $region38: #{tpu_custom_call.1} parent=0 // pred_check
    _
  $region39: #{tpu_custom_call.1} parent=0 // pred_check_branch
    %48 = sbr.rel (0) target = $region41
  $region40: #{tpu_custom_call.1} parent=0 // pred_region
    _
  $region41: #{tpu_custom_call.1} parent=0 // pred_fallthru
    _
  // Predicated region
  $region42: #{tpu_custom_call.1} parent=0 // pred_check
    _
  $region43: #{tpu_custom_call.1} parent=0 // pred_check_branch
    %50 = sbr.rel (0) target = $region45
  $region44: #{tpu_custom_call.1} parent=0 // pred_region
    _
  $region45: #{tpu_custom_call.1} parent=0 // pred_fallthru
    _
  // Predicated region
  $region46: #{tpu_custom_call.1} parent=0 // pred_check
    _
  $region47: #{tpu_custom_call.1} parent=0 // pred_check_branch
    %52 = sbr.rel (0) target = $region49
  $region48: #{tpu_custom_call.1} parent=0 // pred_region
    _
  $region49: #{tpu_custom_call.1} parent=0 // pred_fallthru
    _
  // Predicated region
  $region50: #{tpu_custom_call.1} parent=0 // pred_check
    _
  $region51: #{tpu_custom_call.1} parent=0 // pred_check_branch
    %54 = sbr.rel (0) target = $region53
  $region52: #{tpu_custom_call.1} parent=0 // pred_region
    _
  $region53: #{tpu_custom_call.1} parent=0 // pred_fallthru
    _
  // Predicated region
  $region54: #{tpu_custom_call.1} parent=0 // pred_check
    _
  $region55: #{tpu_custom_call.1} parent=0 // pred_check_branch
    %56 = sbr.rel (0) target = $region57
  $region56: #{tpu_custom_call.1} parent=0 // pred_region
    _
  $region57: #{tpu_custom_call.1} parent=0 // pred_fallthru
    _
  // Predicated region
  $region58: #{tpu_custom_call.1} parent=0 // pred_check
    _
  $region59: #{tpu_custom_call.1} parent=0 // pred_check_branch
    %58 = sbr.rel (0) target = $region61
  $region60: #{tpu_custom_call.1} parent=0 // pred_region
    _
  $region61: #{tpu_custom_call.1} parent=0 // pred_fallthru
    _
  // Predicated region
  $region62: #{tpu_custom_call.1} parent=0 // pred_check
    _
  $region63: #{tpu_custom_call.1} parent=0 // pred_check_branch
    %60 = sbr.rel (0) target = $region65
  $region64: #{tpu_custom_call.1} parent=0 // pred_region
    _
  $region65: #{tpu_custom_call.1} parent=0 // pred_fallthru
    _
  // Predicated region
  $region66: #{tpu_custom_call.1} parent=0 // pred_check
    _
  $region67: #{tpu_custom_call.1} parent=0 // pred_check_branch
    %62 = sbr.rel (0) target = $region69
  $region68: #{tpu_custom_call.1} parent=0 // pred_region
    _
  $region69: #{tpu_custom_call.1} parent=0 // pred_fallthru
    _
  // Predicated region
  $region70: #{tpu_custom_call.1} parent=0 // pred_check
    _
  $region71: #{tpu_custom_call.1} parent=0 // pred_check_branch
    %64 = sbr.rel (0) target = $region73
  $region72: #{tpu_custom_call.1} parent=0 // pred_region
    _
  $region73: #{tpu_custom_call.1} parent=0 // pred_fallthru
    _
  // Predicated region
  $region74: #{tpu_custom_call.1} parent=0 // pred_check
    _
  $region75: #{tpu_custom_call.1} parent=0 // pred_check_branch
    %66 = sbr.rel (0) target = $region77
  $region76: #{tpu_custom_call.1} parent=0 // pred_region
    _
  $region77: #{tpu_custom_call.1} parent=0 // pred_fallthru
    _
  // Predicated region
  $region78: #{tpu_custom_call.1} parent=0 // pred_check
    _
  $region79: #{tpu_custom_call.1} parent=0 // pred_check_branch
    %68 = sbr.rel (0) target = $region81
  $region80: #{tpu_custom_call.1} parent=0 // pred_region
    _
  $region81: #{tpu_custom_call.1} parent=0 // pred_fallthru
    _
  %v69 = vld [vmem:[%s0] sm:$0xff]
  %v70 = vld [vmem:[%s4] sm:$0xff]
  %v71 = vld [vmem:[%s4 + $0x8] sm:$0xff]
  %v72 = vld [vmem:[%s5] sm:$0x1]
  %v74 = vlaneseq
  %v75 = vshrl.u32 %v74, 7
  %v76 = vsub.s32 0, %v75
  %v77 = vrot.slane %v72, %v76
  %vm79 = vcmask 130048
  %v81 = vsel %vm79, %v69, 0
  %83 = vmatprep.subr.mxu0 0.0
  %84 = vmatpush1.msra.mxu0 0.0
  %85 = vmatprep.subr.mxu0 0.0
  %86 = vmatpush1.msra.mxu0 0.0
  %87 = vmatprep.subr.mxu0 0.0
  %88 = vmatpush1.msra.mxu0 0.0
  %89 = vmatprep.subr.mxu0 0.0
  %90 = vmatpush1.msra.mxu0 0.0
  %91 = vmatprep.subr.mxu0 0.0
  %92 = vmatpush1.msra.mxu0 0.0
  %93 = vmatprep.subr.mxu0 0.0
  %94 = vmatpush1.msra.mxu0 0.0
  %95 = vmatprep.subr.mxu0 0.0
  %96 = vmatpush1.msra.mxu0 0.0
  %97 = vmatprep.subr.mxu0 0.0
  %98 = vmatpush1.msra.mxu0 0.0
  %99 = vmatprep.subr.mxu0 0.0
  %100 = vmatpush1.msra.mxu0 0.0
  %101 = vmatprep.subr.mxu0 0.0
  %102 = vmatpush1.msra.mxu0 0.0
  %103 = vmatprep.subr.mxu0 0.0
  %104 = vmatpush1.msra.mxu0 0.0
  %105 = vmatprep.subr.mxu0 0.0
  %106 = vmatpush1.msra.mxu0 0.0
  %107 = vmatprep.subr.mxu0 0.0
  %108 = vmatpush1.msra.mxu0 0.0
  %109 = vmatprep.subr.mxu0 0.0
  %110 = vmatpush1.msra.mxu0 0.0
  %111 = vmatprep.subr.mxu0 0.0
  %112 = vmatpush1.msra.mxu0 %v71
  %113 = vmatprep.subr.mxu0 0.0
  %114 = vmatpush1.msra.mxu0 %v70
  %115 = vmatprep.subr.mxu0 0.0
  %116 = vmatpush2.msra.mxu0 0.0
  %117 = vmatprep.subr.mxu0 0.0
  %118 = vmatpush2.msra.mxu0 0.0
  %119 = vmatprep.subr.mxu0 0.0
  %120 = vmatpush2.msra.mxu0 0.0
  %121 = vmatprep.subr.mxu0 0.0
  %122 = vmatpush2.msra.mxu0 0.0
  %123 = vmatprep.subr.mxu0 0.0
  %124 = vmatpush2.msra.mxu0 0.0
  %125 = vmatprep.subr.mxu0 0.0
  %126 = vmatpush2.msra.mxu0 0.0
  %127 = vmatprep.subr.mxu0 0.0
  %128 = vmatpush2.msra.mxu0 0.0
  %129 = vmatprep.subr.mxu0 0.0
  %130 = vmatpush2.msra.mxu0 0.0
  %131 = vmatprep.subr.mxu0 0.0
  %132 = vmatpush2.msra.mxu0 0.0
  %133 = vmatprep.subr.mxu0 0.0
  %134 = vmatpush2.msra.mxu0 0.0
  %135 = vmatprep.subr.mxu0 0.0
  %136 = vmatpush2.msra.mxu0 0.0
  %137 = vmatprep.subr.mxu0 0.0
  %138 = vmatpush2.msra.mxu0 0.0
  %139 = vmatprep.subr.mxu0 0.0
  %140 = vmatpush2.msra.mxu0 0.0
  %141 = vmatprep.subr.mxu0 0.0
  %142 = vmatpush2.msra.mxu0 0.0
  %143 = vmatprep.subr.mxu0 0.0
  %144 = vmatpush2.msra.mxu0 0.0
  %145 = vmatprep.subr.mxu0 0.0
  %146 = vmatpush2.msra.mxu0 0.0
  %147 = vmatprep.mubr.f32.mxu0 0.0
  %148 = vmatmul.mubr.f32.gmra.mxu0 %v81
  %v149 = vpop.f32.mrf.mxu0
  %v150 = vadd.f32 %v77, %v149
  %v151 = vpop.f32.mrf.mxu0
  %152 = vdwg.mxu0
  %v153 = vld [vmem:[%s1] sm:$0xff]
  %v154 = vld [vmem:[%s6] sm:$0xff]
  %v155 = vld [vmem:[%s6 + $0x8] sm:$0xff]
  %v156 = vld [vmem:[%s7] sm:$0x1]
  %v158 = vlaneseq
  %v159 = vshrl.u32 %v158, 7
  %v160 = vsub.s32 0, %v159
  %v161 = vrot.slane %v156, %v160
  %v164 = vsel %vm79, %v153, 0
  %166 = vmatprep.subr.mxu0 0.0
  %167 = vmatpush1.msra.mxu0 0.0
  %168 = vmatprep.subr.mxu0 0.0
  %169 = vmatpush1.msra.mxu0 0.0
  %170 = vmatprep.subr.mxu0 0.0
  %171 = vmatpush1.msra.mxu0 0.0
  %172 = vmatprep.subr.mxu0 0.0
  %173 = vmatpush1.msra.mxu0 0.0
  %174 = vmatprep.subr.mxu0 0.0
  %175 = vmatpush1.msra.mxu0 0.0
  %176 = vmatprep.subr.mxu0 0.0
  %177 = vmatpush1.msra.mxu0 0.0
  %178 = vmatprep.subr.mxu0 0.0
  %179 = vmatpush1.msra.mxu0 0.0
  %180 = vmatprep.subr.mxu0 0.0
  %181 = vmatpush1.msra.mxu0 0.0
  %182 = vmatprep.subr.mxu0 0.0
  %183 = vmatpush1.msra.mxu0 0.0
  %184 = vmatprep.subr.mxu0 0.0
  %185 = vmatpush1.msra.mxu0 0.0
  %186 = vmatprep.subr.mxu0 0.0
  %187 = vmatpush1.msra.mxu0 0.0
  %188 = vmatprep.subr.mxu0 0.0
  %189 = vmatpush1.msra.mxu0 0.0
  %190 = vmatprep.subr.mxu0 0.0
  %191 = vmatpush1.msra.mxu0 0.0
  %192 = vmatprep.subr.mxu0 0.0
  %193 = vmatpush1.msra.mxu0 0.0
  %194 = vmatprep.subr.mxu0 0.0
  %195 = vmatpush1.msra.mxu0 %v155
  %196 = vmatprep.subr.mxu0 0.0
  %197 = vmatpush1.msra.mxu0 %v154
  %198 = vmatprep.subr.mxu0 0.0
  %199 = vmatpush2.msra.mxu0 0.0
  %200 = vmatprep.subr.mxu0 0.0
  %201 = vmatpush2.msra.mxu0 0.0
  %202 = vmatprep.subr.mxu0 0.0
  %203 = vmatpush2.msra.mxu0 0.0
  %204 = vmatprep.subr.mxu0 0.0
  %205 = vmatpush2.msra.mxu0 0.0
  %206 = vmatprep.subr.mxu0 0.0
  %207 = vmatpush2.msra.mxu0 0.0
  %208 = vmatprep.subr.mxu0 0.0
  %209 = vmatpush2.msra.mxu0 0.0
  %210 = vmatprep.subr.mxu0 0.0
  %211 = vmatpush2.msra.mxu0 0.0
  %212 = vmatprep.subr.mxu0 0.0
  %213 = vmatpush2.msra.mxu0 0.0
  %214 = vmatprep.subr.mxu0 0.0
  %215 = vmatpush2.msra.mxu0 0.0
  %216 = vmatprep.subr.mxu0 0.0
  %217 = vmatpush2.msra.mxu0 0.0
  %218 = vmatprep.subr.mxu0 0.0
  %219 = vmatpush2.msra.mxu0 0.0
  %220 = vmatprep.subr.mxu0 0.0
  %221 = vmatpush2.msra.mxu0 0.0
  %222 = vmatprep.subr.mxu0 0.0
  %223 = vmatpush2.msra.mxu0 0.0
  %224 = vmatprep.subr.mxu0 0.0
  %225 = vmatpush2.msra.mxu0 0.0
  %226 = vmatprep.subr.mxu0 0.0
  %227 = vmatpush2.msra.mxu0 0.0
  %228 = vmatprep.subr.mxu0 0.0
  %229 = vmatpush2.msra.mxu0 0.0
  %230 = vmatprep.mubr.f32.mxu0 0.0
  %231 = vmatmul.mubr.f32.gmra.mxu0 %v164
  %v232 = vpop.f32.mrf.mxu0
  %v233 = vadd.f32 %v161, %v232
  %v234 = vpop.f32.mrf.mxu0
  %235 = vdwg.mxu0
  %v236 = vld [vmem:[%s2] sm:$0xff]
  %v237 = vld [vmem:[%s8] sm:$0xff]
  %v238 = vld [vmem:[%s8 + $0x8] sm:$0xff]
  %v239 = vld [vmem:[%s9] sm:$0x1]
  %v241 = vlaneseq
  %v242 = vshrl.u32 %v241, 7
  %v243 = vsub.s32 0, %v242
  %v244 = vrot.slane %v239, %v243
  %v247 = vsel %vm79, %v236, 0
  %249 = vmatprep.subr.mxu0 0.0
  %250 = vmatpush1.msra.mxu0 0.0
  %251 = vmatprep.subr.mxu0 0.0
  %252 = vmatpush1.msra.mxu0 0.0
  %253 = vmatprep.subr.mxu0 0.0
  %254 = vmatpush1.msra.mxu0 0.0
  %255 = vmatprep.subr.mxu0 0.0
  %256 = vmatpush1.msra.mxu0 0.0
  %257 = vmatprep.subr.mxu0 0.0
  %258 = vmatpush1.msra.mxu0 0.0
  %259 = vmatprep.subr.mxu0 0.0
  %260 = vmatpush1.msra.mxu0 0.0
  %261 = vmatprep.subr.mxu0 0.0
  %262 = vmatpush1.msra.mxu0 0.0
  %263 = vmatprep.subr.mxu0 0.0
  %264 = vmatpush1.msra.mxu0 0.0
  %265 = vmatprep.subr.mxu0 0.0
  %266 = vmatpush1.msra.mxu0 0.0
  %267 = vmatprep.subr.mxu0 0.0
  %268 = vmatpush1.msra.mxu0 0.0
  %269 = vmatprep.subr.mxu0 0.0
  %270 = vmatpush1.msra.mxu0 0.0
  %271 = vmatprep.subr.mxu0 0.0
  %272 = vmatpush1.msra.mxu0 0.0
  %273 = vmatprep.subr.mxu0 0.0
  %274 = vmatpush1.msra.mxu0 0.0
  %275 = vmatprep.subr.mxu0 0.0
  %276 = vmatpush1.msra.mxu0 0.0
  %277 = vmatprep.subr.mxu0 0.0
  %278 = vmatpush1.msra.mxu0 %v238
  %279 = vmatprep.subr.mxu0 0.0
  %280 = vmatpush1.msra.mxu0 %v237
  %281 = vmatprep.subr.mxu0 0.0
  %282 = vmatpush2.msra.mxu0 0.0
  %283 = vmatprep.subr.mxu0 0.0
  %284 = vmatpush2.msra.mxu0 0.0
  %285 = vmatprep.subr.mxu0 0.0
  %286 = vmatpush2.msra.mxu0 0.0
  %287 = vmatprep.subr.mxu0 0.0
  %288 = vmatpush2.msra.mxu0 0.0
  %289 = vmatprep.subr.mxu0 0.0
  %290 = vmatpush2.msra.mxu0 0.0
  %291 = vmatprep.subr.mxu0 0.0
  %292 = vmatpush2.msra.mxu0 0.0
  %293 = vmatprep.subr.mxu0 0.0
  %294 = vmatpush2.msra.mxu0 0.0
  %295 = vmatprep.subr.mxu0 0.0
  %296 = vmatpush2.msra.mxu0 0.0
  %297 = vmatprep.subr.mxu0 0.0
  %298 = vmatpush2.msra.mxu0 0.0
  %299 = vmatprep.subr.mxu0 0.0
  %300 = vmatpush2.msra.mxu0 0.0
  %301 = vmatprep.subr.mxu0 0.0
  %302 = vmatpush2.msra.mxu0 0.0
  %303 = vmatprep.subr.mxu0 0.0
  %304 = vmatpush2.msra.mxu0 0.0
  %305 = vmatprep.subr.mxu0 0.0
  %306 = vmatpush2.msra.mxu0 0.0
  %307 = vmatprep.subr.mxu0 0.0
  %308 = vmatpush2.msra.mxu0 0.0
  %309 = vmatprep.subr.mxu0 0.0
  %310 = vmatpush2.msra.mxu0 0.0
  %311 = vmatprep.subr.mxu0 0.0
  %312 = vmatpush2.msra.mxu0 0.0
  %313 = vmatprep.mubr.f32.mxu0 0.0
  %314 = vmatmul.mubr.f32.gmra.mxu0 %v247
  %v315 = vpop.f32.mrf.mxu0
  %v316 = vadd.f32 %v244, %v315
  %v317 = vpop.f32.mrf.mxu0
  %318 = vdwg.mxu0
  %v319 = vld [vmem:[%s3] sm:$0xff]
  %v320 = vld [vmem:[%s10] sm:$0xff]
  %v321 = vld [vmem:[%s10 + $0x8] sm:$0xff]
  %v322 = vld [vmem:[%s11] sm:$0x1]
  %v324 = vlaneseq
  %v325 = vshrl.u32 %v324, 7
  %v326 = vsub.s32 0, %v325
  %v327 = vrot.slane %v322, %v326
  %v330 = vsel %vm79, %v319, 0
  %332 = vmatprep.subr.mxu0 0.0
  %333 = vmatpush1.msra.mxu0 0.0
  %334 = vmatprep.subr.mxu0 0.0
  %335 = vmatpush1.msra.mxu0 0.0
  %336 = vmatprep.subr.mxu0 0.0
  %337 = vmatpush1.msra.mxu0 0.0
  %338 = vmatprep.subr.mxu0 0.0
  %339 = vmatpush1.msra.mxu0 0.0
  %340 = vmatprep.subr.mxu0 0.0
  %341 = vmatpush1.msra.mxu0 0.0
  %342 = vmatprep.subr.mxu0 0.0
  %343 = vmatpush1.msra.mxu0 0.0
  %344 = vmatprep.subr.mxu0 0.0
  %345 = vmatpush1.msra.mxu0 0.0
  %346 = vmatprep.subr.mxu0 0.0
  %347 = vmatpush1.msra.mxu0 0.0
  %348 = vmatprep.subr.mxu0 0.0
  %349 = vmatpush1.msra.mxu0 0.0
  %350 = vmatprep.subr.mxu0 0.0
  %351 = vmatpush1.msra.mxu0 0.0
  %352 = vmatprep.subr.mxu0 0.0
  %353 = vmatpush1.msra.mxu0 0.0
  %354 = vmatprep.subr.mxu0 0.0
  %355 = vmatpush1.msra.mxu0 0.0
  %356 = vmatprep.subr.mxu0 0.0
  %357 = vmatpush1.msra.mxu0 0.0
  %358 = vmatprep.subr.mxu0 0.0
  %359 = vmatpush1.msra.mxu0 0.0
  %360 = vmatprep.subr.mxu0 0.0
  %361 = vmatpush1.msra.mxu0 %v321
  %362 = vmatprep.subr.mxu0 0.0
  %363 = vmatpush1.msra.mxu0 %v320
  %364 = vmatprep.subr.mxu0 0.0
  %365 = vmatpush2.msra.mxu0 0.0
  %366 = vmatprep.subr.mxu0 0.0
  %367 = vmatpush2.msra.mxu0 0.0
  %368 = vmatprep.subr.mxu0 0.0
  %369 = vmatpush2.msra.mxu0 0.0
  %370 = vmatprep.subr.mxu0 0.0
  %371 = vmatpush2.msra.mxu0 0.0
  %372 = vmatprep.subr.mxu0 0.0
  %373 = vmatpush2.msra.mxu0 0.0
  %374 = vmatprep.subr.mxu0 0.0
  %375 = vmatpush2.msra.mxu0 0.0
  %376 = vmatprep.subr.mxu0 0.0
  %377 = vmatpush2.msra.mxu0 0.0
  %378 = vmatprep.subr.mxu0 0.0
  %379 = vmatpush2.msra.mxu0 0.0
  %380 = vmatprep.subr.mxu0 0.0
  %381 = vmatpush2.msra.mxu0 0.0
  %382 = vmatprep.subr.mxu0 0.0
  %383 = vmatpush2.msra.mxu0 0.0
  %384 = vmatprep.subr.mxu0 0.0
  %385 = vmatpush2.msra.mxu0 0.0
  %386 = vmatprep.subr.mxu0 0.0
  %387 = vmatpush2.msra.mxu0 0.0
  %388 = vmatprep.subr.mxu0 0.0
  %389 = vmatpush2.msra.mxu0 0.0
  %390 = vmatprep.subr.mxu0 0.0
  %391 = vmatpush2.msra.mxu0 0.0
  %392 = vmatprep.subr.mxu0 0.0
  %393 = vmatpush2.msra.mxu0 0.0
  %394 = vmatprep.subr.mxu0 0.0
  %395 = vmatpush2.msra.mxu0 0.0
  %396 = vmatprep.mubr.f32.mxu0 0.0
  %397 = vmatmul.mubr.f32.gmra.mxu0 %v330
  %v398 = vpop.f32.mrf.mxu0
  %v399 = vadd.f32 %v327, %v398
  %v400 = vpop.f32.mrf.mxu0
  %401 = vdwg.mxu0
  %403 = vrot.lane.b32.xlu0 %v233, 8
  %v404 = vpop.permute.xlu0 %403
  %407 = vrot.lane.b32.xlu0 %v316, 16
  %v408 = vpop.permute.xlu0 %407
  %411 = vrot.lane.b32.xlu0 %v399, 24
  %v412 = vpop.permute.xlu0 %411
  %vm414 = vcmask 64512
  %v415 = vsel %vm414, %v150, %v404
  %v416 = vsel %vm79, %v415, %v408
  %vm417 = vcmask 195584
  %v418 = vsel %vm417, %v416, %v412
  %v419 = vld [vmem:[%s12] sm:$0xff]
  %v420 = vld [vmem:[%s12 + $0x8] sm:$0xff]
  %v421 = vld [vmem:[%s12 + $0x10] sm:$0xff]
  %v422 = vld [vmem:[%s12 + $0x18] sm:$0xff]
  %v423 = vld [vmem:[%s13] sm:$0x1]
  %v425 = vlaneseq
  %v426 = vshrl.u32 %v425, 7
  %v427 = vsub.s32 0, %v426
  %v428 = vrot.slane %v423, %v427
  %vm430 = vcmask 261120
  %v432 = vsel %vm430, %v418, 0
  %434 = vmatprep.subr.mxu0 0.0
  %435 = vmatpush1.msra.mxu0 0.0
  %436 = vmatprep.subr.mxu0 0.0
  %437 = vmatpush1.msra.mxu0 0.0
  %438 = vmatprep.subr.mxu0 0.0
  %439 = vmatpush1.msra.mxu0 0.0
  %440 = vmatprep.subr.mxu0 0.0
  %441 = vmatpush1.msra.mxu0 0.0
  %442 = vmatprep.subr.mxu0 0.0
  %443 = vmatpush1.msra.mxu0 0.0
  %444 = vmatprep.subr.mxu0 0.0
  %445 = vmatpush1.msra.mxu0 0.0
  %446 = vmatprep.subr.mxu0 0.0
  %447 = vmatpush1.msra.mxu0 0.0
  %448 = vmatprep.subr.mxu0 0.0
  %449 = vmatpush1.msra.mxu0 0.0
  %450 = vmatprep.subr.mxu0 0.0
  %451 = vmatpush1.msra.mxu0 0.0
  %452 = vmatprep.subr.mxu0 0.0
  %453 = vmatpush1.msra.mxu0 0.0
  %454 = vmatprep.subr.mxu0 0.0
  %455 = vmatpush1.msra.mxu0 0.0
  %456 = vmatprep.subr.mxu0 0.0
  %457 = vmatpush1.msra.mxu0 0.0
  %458 = vmatprep.subr.mxu0 0.0
  %459 = vmatpush1.msra.mxu0 %v422
  %460 = vmatprep.subr.mxu0 0.0
  %461 = vmatpush1.msra.mxu0 %v421
  %462 = vmatprep.subr.mxu0 0.0
  %463 = vmatpush1.msra.mxu0 %v420
  %464 = vmatprep.subr.mxu0 0.0
  %465 = vmatpush1.msra.mxu0 %v419
  %466 = vmatprep.subr.mxu0 0.0
  %467 = vmatpush2.msra.mxu0 0.0
  %468 = vmatprep.subr.mxu0 0.0
  %469 = vmatpush2.msra.mxu0 0.0
  %470 = vmatprep.subr.mxu0 0.0
  %471 = vmatpush2.msra.mxu0 0.0
  %472 = vmatprep.subr.mxu0 0.0
  %473 = vmatpush2.msra.mxu0 0.0
  %474 = vmatprep.subr.mxu0 0.0
  %475 = vmatpush2.msra.mxu0 0.0
  %476 = vmatprep.subr.mxu0 0.0
  %477 = vmatpush2.msra.mxu0 0.0
  %478 = vmatprep.subr.mxu0 0.0
  %479 = vmatpush2.msra.mxu0 0.0
  %480 = vmatprep.subr.mxu0 0.0
  %481 = vmatpush2.msra.mxu0 0.0
  %482 = vmatprep.subr.mxu0 0.0
  %483 = vmatpush2.msra.mxu0 0.0
  %484 = vmatprep.subr.mxu0 0.0
  %485 = vmatpush2.msra.mxu0 0.0
  %486 = vmatprep.subr.mxu0 0.0
  %487 = vmatpush2.msra.mxu0 0.0
  %488 = vmatprep.subr.mxu0 0.0
  %489 = vmatpush2.msra.mxu0 0.0
  %490 = vmatprep.subr.mxu0 0.0
  %491 = vmatpush2.msra.mxu0 0.0
  %492 = vmatprep.subr.mxu0 0.0
  %493 = vmatpush2.msra.mxu0 0.0
  %494 = vmatprep.subr.mxu0 0.0
  %495 = vmatpush2.msra.mxu0 0.0
  %496 = vmatprep.subr.mxu0 0.0
  %497 = vmatpush2.msra.mxu0 0.0
  %498 = vmatprep.mubr.f32.mxu0 0.0
  %499 = vmatmul.mubr.f32.gmra.mxu0 %v432
  %v500 = vpop.f32.mrf.mxu0
  %v501 = vadd.f32 %v428, %v500
  %v502 = vpop.f32.mrf.mxu0
  %503 = vdwg.mxu0
  %v504 = vmax.f32 %v501, 0.0
  %v505 = vld [vmem:[%s14] sm:$0xff]
  %v506 = vld [vmem:[%s14 + $0x8] sm:$0xff]
  %v507 = vld [vmem:[%s14 + $0x10] sm:$0xff]
  %v508 = vld [vmem:[%s14 + $0x18] sm:$0xff]
  %v509 = vld [vmem:[%s14 + $0x20] sm:$0xff]
  %v510 = vld [vmem:[%s14 + $0x28] sm:$0xff]
  %v511 = vld [vmem:[%s14 + $0x30] sm:$0xff]
  %v512 = vld [vmem:[%s14 + $0x38] sm:$0xff]
  %v513 = vld [vmem:[%s15] sm:$0x1]
  %v515 = vlaneseq
  %v516 = vshrl.u32 %v515, 7
  %v517 = vsub.s32 0, %v516
  %v518 = vrot.slane %v513, %v517
  %vm520 = vcmask 523264
  %v522 = vsel %vm520, %v504, 0
  %524 = vmatprep.subr.mxu0 0.0
  %525 = vmatpush1.msra.mxu0 0.0
  %526 = vmatprep.subr.mxu0 0.0
  %527 = vmatpush1.msra.mxu0 0.0
  %528 = vmatprep.subr.mxu0 0.0
  %529 = vmatpush1.msra.mxu0 0.0
  %530 = vmatprep.subr.mxu0 0.0
  %531 = vmatpush1.msra.mxu0 0.0
  %532 = vmatprep.subr.mxu0 0.0
  %533 = vmatpush1.msra.mxu0 0.0
  %534 = vmatprep.subr.mxu0 0.0
  %535 = vmatpush1.msra.mxu0 0.0
  %536 = vmatprep.subr.mxu0 0.0
  %537 = vmatpush1.msra.mxu0 0.0
  %538 = vmatprep.subr.mxu0 0.0
  %539 = vmatpush1.msra.mxu0 0.0
  %540 = vmatprep.subr.mxu0 0.0
  %541 = vmatpush1.msra.mxu0 %v512
  %542 = vmatprep.subr.mxu0 0.0
  %543 = vmatpush1.msra.mxu0 %v511
  %544 = vmatprep.subr.mxu0 0.0
  %545 = vmatpush1.msra.mxu0 %v510
  %546 = vmatprep.subr.mxu0 0.0
  %547 = vmatpush1.msra.mxu0 %v509
  %548 = vmatprep.subr.mxu0 0.0
  %549 = vmatpush1.msra.mxu0 %v508
  %550 = vmatprep.subr.mxu0 0.0
  %551 = vmatpush1.msra.mxu0 %v507
  %552 = vmatprep.subr.mxu0 0.0
  %553 = vmatpush1.msra.mxu0 %v506
  %554 = vmatprep.subr.mxu0 0.0
  %555 = vmatpush1.msra.mxu0 %v505
  %556 = vmatprep.subr.mxu0 0.0
  %557 = vmatpush2.msra.mxu0 0.0
  %558 = vmatprep.subr.mxu0 0.0
  %559 = vmatpush2.msra.mxu0 0.0
  %560 = vmatprep.subr.mxu0 0.0
  %561 = vmatpush2.msra.mxu0 0.0
  %562 = vmatprep.subr.mxu0 0.0
  %563 = vmatpush2.msra.mxu0 0.0
  %564 = vmatprep.subr.mxu0 0.0
  %565 = vmatpush2.msra.mxu0 0.0
  %566 = vmatprep.subr.mxu0 0.0
  %567 = vmatpush2.msra.mxu0 0.0
  %568 = vmatprep.subr.mxu0 0.0
  %569 = vmatpush2.msra.mxu0 0.0
  %570 = vmatprep.subr.mxu0 0.0
  %571 = vmatpush2.msra.mxu0 0.0
  %572 = vmatprep.subr.mxu0 0.0
  %573 = vmatpush2.msra.mxu0 0.0
  %574 = vmatprep.subr.mxu0 0.0
  %575 = vmatpush2.msra.mxu0 0.0
  %576 = vmatprep.subr.mxu0 0.0
  %577 = vmatpush2.msra.mxu0 0.0
  %578 = vmatprep.subr.mxu0 0.0
  %579 = vmatpush2.msra.mxu0 0.0
  %580 = vmatprep.subr.mxu0 0.0
  %581 = vmatpush2.msra.mxu0 0.0
  %582 = vmatprep.subr.mxu0 0.0
  %583 = vmatpush2.msra.mxu0 0.0
  %584 = vmatprep.subr.mxu0 0.0
  %585 = vmatpush2.msra.mxu0 0.0
  %586 = vmatprep.subr.mxu0 0.0
  %587 = vmatpush2.msra.mxu0 0.0
  %588 = vmatprep.mubr.f32.mxu0 0.0
  %589 = vmatmul.mubr.f32.gmra.mxu0 %v522
  %v590 = vpop.f32.mrf.mxu0
  %v591 = vadd.f32 %v518, %v590
  %v592 = vpop.f32.mrf.mxu0
  %593 = vdwg.mxu0
  %v594 = vmax.f32 %v591, 0.0
  %v595 = vld [vmem:[%s16] sm:$0x3]
  %v596 = vlaneseq
  %v597 = vshrl.u32 %v596, 7
  %v598 = vsub.s32 0, %v597
  %v599 = vrot.slane %v595, %v598
  %v600 = vmul.f32 %v594, %v599
  %v601 = vsel %vm430, %v600, 0.0
  %602 = vadd.xlane.f32.xlu0 %v601
  %v603 = vpop.xlane.xlu0 %602
  %v604 = vlaneseq
  %v605 = vshrl.u32 %v604, 7
  %v606 = vsub.s32 1, %v605
  %v607 = vrot.slane %v595, %v606
  %v608 = vmul.f32 %v594, %v607
  %v609 = vsel %vm430, %v608, 0.0
  %610 = vadd.xlane.f32.xlu0 %v609
  %v611 = vpop.xlane.xlu0 %610
  %vm612 = vcmask 7168
  %v613 = vsel %vm612, %v603, %v611
  %v614 = vld [vmem:[%s17] sm:$0x1]
  %v616 = vlaneseq
  %v617 = vshrl.u32 %v616, 7
  %v618 = vsub.s32 0, %v617
  %v619 = vrot.slane %v614, %v618
  %v621 = vadd.f32 %v613, %v619
  %vm622 = vcmask 15360
  %623 = vst.msk [vmem:[%s20] sm:$0xff] %vm622, %v621
  %v624 = vld [vmem:[%s18] sm:$0x1]
  %v626 = vlaneseq
  %v627 = vshrl.u32 %v626, 7
  %v628 = vsub.s32 0, %v627
  %v629 = vrot.slane %v624, %v628
  %v631 = vmul.f32 %v621, %v629
  %v632 = vsel %vm622, %v631, 0.0
  %633 = vadd.xlane.f32.xlu0 %v632
  %v634 = vpop.xlane.xlu0 %633
  %v635 = vld [vmem:[#allocation2] sm:$0x1]
  %v637 = vlaneseq
  %v638 = vshrl.u32 %v637, 7
  %v639 = vsub.s32 0, %v638
  %v640 = vrot.slane %v635, %v639
  %v642 = vadd.f32 %v634, %v640
  %v643 = vxor.u32 %v642, 2147483648
  %v644 = vmul.f32 %v643, 1.442695
  %v645 = vpow.pop %v644
  %v646 = vadd.f32 %v645, 1.0
  %v647 = vrcp.pop %v646
  %v648 = vmul.f32 1.0, %v647
  %649 = vst.msk [vmem:[%s21] sm:$0xff] %vm612, %v648
  // Predicated region
  $region82: #{tpu_custom_call.1} parent=0 // pred_check
    _
  $region83: #{tpu_custom_call.1} parent=0 // pred_check_branch
    %651 = sbr.rel (0) target = $region85
  $region84: #{tpu_custom_call.1} parent=0 // pred_region
    _
  $region85: #{tpu_custom_call.1} parent=0 // pred_fallthru
    _
  // Predicated region
  $region86: #{tpu_custom_call.1} parent=0 // pred_check
    _
  $region87: #{tpu_custom_call.1} parent=0 // pred_check_branch
    %653 = sbr.rel (0) target = $region89
  $region88: #{tpu_custom_call.1} parent=0 // pred_region
    _
  $region89: #{tpu_custom_call.1} parent=0 // pred_fallthru
    _
  // Predicated region
  $region90: #{tpu_custom_call.1} parent=0 // pred_check
    _
  $region91: #{tpu_custom_call.1} parent=0 // pred_check_branch
    %655 = sbr.rel (0) target = $region93
  $region92: #{tpu_custom_call.1} parent=0 // pred_region
    _
  $region93: #{tpu_custom_call.1} parent=0 // pred_fallthru
    _
  // Predicated region
  $region94: #{tpu_custom_call.1} parent=0 // pred_check
    _
  $region95: #{tpu_custom_call.1} parent=0 // pred_check_branch
    %657 = sbr.rel (0) target = $region97
  $region96: #{tpu_custom_call.1} parent=0 // pred_region
    _
  $region97: #{tpu_custom_call.1} parent=0 // pred_fallthru
    _

</llo_original>
